<compile_context>
chip_gen: v7x
topology: tpu7x:2x2x1
jax: 0.10.0
libtpu: 0.0.40
codegen_flags: <defaults>
</compile_context>

<pallas_src>
import jax
import jax.numpy as jnp
from jax.experimental import pallas as pl
from jax.experimental.pallas import tpu as pltpu


def _round_up(x, m):
    return ((x + m - 1) // m) * m


def _fused_article_embedding_kernel(x_ref, w_ref, b_ref, tok_ref, o_ref):
    # One MXU pass on the pre-fused weight, then bias + residual add on the VPU.
    out = jnp.dot(x_ref[...], w_ref[...], preferred_element_type=jnp.float32)
    o_ref[...] = (out + b_ref[...] + tok_ref[...]).astype(o_ref.dtype)


def fuse_article_params(w1, b1, w2, b2):
    """Fuse the two bias-chained Linears (valid: no nonlinearity between them).

    W = w1 @ w2  (feat, emb),  b = b1 @ w2 + b2  (1, emb).
    Call ONCE at parameter-setup time, not per forward call.
    """
    w_fused = jnp.dot(w1.astype(jnp.float32), w2.astype(jnp.float32))
    b_fused = (jnp.dot(b1.astype(jnp.float32), w2.astype(jnp.float32))
               + b2.astype(jnp.float32))
    # Deliberate cast back to the parameter dtype (avoid mixed-dtype dots later).
    return w_fused.astype(w1.dtype), b_fused.astype(w1.dtype)


def article_embedding(tok_emb, article_features, w_fused, b_fused, tile_n=1024):
    """tok_emb: [..., emb], article_features: [..., feat].

    w_fused: (feat, emb) pre-fused weight, b_fused: (1, emb) pre-fused bias
    (weights stored (in_features, out_features), i.e. transposed vs. PyTorch).
    """
    orig_shape = tok_emb.shape
    emb = orig_shape[-1]
    feat = article_features.shape[-1]

    tok2d = tok_emb.reshape(-1, emb)
    x2d = article_features.reshape(-1, feat)
    n = x2d.shape[0]

    act_isz = jnp.dtype(tok_emb.dtype).itemsize
    w_isz = jnp.dtype(w_fused.dtype).itemsize

    # Row tile: multiple of 8 sublanes (no row-padding copy in HBM; Pallas
    # masks the ragged edge block's out-of-bounds writes).
    tn = min(tile_n, _round_up(n, 8))

    # Keep double-buffered x/tok/out tiles + the resident fused W/b under the
    # scoped-VMEM budget (32 MiB works on v5e/v6e and within v7x's 64 MiB).
    vmem_limit = 32 * 1024 * 1024
    resident = 2 * (feat * emb + emb) * w_isz          # W + b (double-buffered)
    per_row = 2 * (feat + 2 * emb) * act_isz           # x + tok + out, 2 buffers
    budget = vmem_limit - resident - (2 << 20)         # headroom
    tn = min(tn, max(8, (budget // max(per_row, 1)) // 8 * 8))
    # TODO(synk): for very large emb (resident W near the budget), add a grid
    # axis over emb / single-buffer W via pipeline_mode=pl.Buffered(1).

    grid_n = pl.cdiv(n, tn)

    cost = pl.CostEstimate(
        flops=2 * n * feat * emb,
        transcendentals=0,
        bytes_accessed=act_isz * (n * feat + 2 * n * emb)
                       + w_isz * (feat * emb + emb),
    )

    out = pl.pallas_call(
        _fused_article_embedding_kernel,
        out_shape=jax.ShapeDtypeStruct((n, emb), tok_emb.dtype),
        grid_spec=pltpu.PrefetchScalarGridSpec(
            num_scalar_prefetch=0,
            grid=(grid_n,),
            in_specs=[
                pl.BlockSpec((tn, feat), lambda i: (i, 0)),    # x row tile
                pl.BlockSpec((feat, emb), lambda i: (0, 0)),   # fused W (resident)
                pl.BlockSpec((1, emb), lambda i: (0, 0)),      # fused b (resident)
                pl.BlockSpec((tn, emb), lambda i: (i, 0)),     # tok row tile
            ],
            out_specs=pl.BlockSpec((tn, emb), lambda i: (i, 0)),
        ),
        compiler_params=pltpu.CompilerParams(
            dimension_semantics=("parallel",),      # megacore-shard row tiles
            vmem_limit_bytes=vmem_limit,
        ),
        cost_estimate=cost,
        input_output_aliases={3: 0},                # donate tok buffer as output
    )(x2d, w_fused, b_fused, tok2d)

    return out.reshape(orig_shape)


def init_params(key, article_features_size, emb_size, dtype=jnp.float32):
    """Deterministic synthetic params matching nn.Linear init/shapes.

    PyTorch: article_emb.weight (2*emb, feat), article_emb.bias (2*emb,)
             out.weight (emb, 2*emb),          out.bias (emb,)
    Stored transposed here: (in, out); biases as (1, out).
    """
    hid = emb_size * 2
    k1, k2, k3, k4 = jax.random.split(key, 4)
    bound1 = 1.0 / (article_features_size ** 0.5)
    bound2 = 1.0 / (hid ** 0.5)
    w1 = jax.random.uniform(k1, (article_features_size, hid), dtype,
                            minval=-bound1, maxval=bound1)
    b1 = jax.random.uniform(k2, (1, hid), dtype, minval=-bound1, maxval=bound1)
    w2 = jax.random.uniform(k3, (hid, emb_size), dtype,
                            minval=-bound2, maxval=bound2)
    b2 = jax.random.uniform(k4, (1, emb_size), dtype,
                            minval=-bound2, maxval=bound2)
    return w1, b1, w2, b2


if __name__ == "__main__":
    key = jax.random.PRNGKey(0)
    batch, seq = 2, 8
    article_features_size = 32
    emb_size = 32

    kp, kt, kf = jax.random.split(key, 3)
    w1, b1, w2, b2 = init_params(kp, article_features_size, emb_size)

    # Weight fusion done once, off the per-call path.
    w_fused, b_fused = fuse_article_params(w1, b1, w2, b2)

    tok_emb = jax.random.normal(kt, (batch, seq, emb_size), jnp.float32)
    article_features = jax.random.normal(
        kf, (batch, seq, article_features_size), jnp.float32)

    out = article_embedding(tok_emb, article_features, w_fused, b_fused)
    out = jax.block_until_ready(out)

    # Pure-JAX reference: un-fused two-Linear path, same math as PyTorch.
    ref = (article_features @ w1 + b1[0]) @ w2 + b2[0] + tok_emb
    assert out.shape == tok_emb.shape
    # Fusion changes accumulation order slightly; tolerance reflects that.
    assert jnp.allclose(out, ref, atol=1e-4, rtol=1e-4), (
        float(jnp.max(jnp.abs(out - ref))))

    print("KERNEL_OK")
</pallas_src>

<mosaic_0001>
module attributes {stable_mosaic.version = 11 : i64} {
  func.func @_fused_article_embedding_kernel(%arg0: i32, %arg1: memref<16x32xf32, #tpu.memory_space<vmem>>, %arg2: memref<32x32xf32, #tpu.memory_space<vmem>>, %arg3: memref<1x32xf32, #tpu.memory_space<vmem>>, %arg4: memref<16x32xf32, #tpu.memory_space<vmem>>, %arg5: memref<16x32xf32, #tpu.memory_space<vmem>>) attributes {dimension_semantics = [#tpu.dimension_semantics<parallel>], iteration_bounds = array<i64: 1>, scalar_prefetch = 0 : i64, scratch_operands = 0 : i64, tpu.core_type = #tpu.core_type<tc>, window_params = [{transform_indices = @transform_0, window_bounds = array<i64: 16, 32>}, {pipeline_mode = #tpu.pipeline_mode<synchronous>, transform_indices = @transform_1, window_bounds = array<i64: 32, 32>}, {pipeline_mode = #tpu.pipeline_mode<synchronous>, transform_indices = @transform_2, window_bounds = array<i64: 1, 32>}, {transform_indices = @transform_3, window_bounds = array<i64: 16, 32>}, {transform_indices = @transform_4, window_bounds = array<i64: 16, 32>}]} {
    %c0 = arith.constant 0 : index
    %c0_0 = arith.constant 0 : index
    %0 = vector.load %arg1[%c0, %c0_0] : memref<16x32xf32, #tpu.memory_space<vmem>>, vector<16x32xf32>
    %c0_1 = arith.constant 0 : index
    %c0_2 = arith.constant 0 : index
    %1 = vector.load %arg2[%c0_1, %c0_2] : memref<32x32xf32, #tpu.memory_space<vmem>>, vector<32x32xf32>
    %cst = arith.constant dense<0.000000e+00> : vector<16x32xf32>
    %2 = tpu.matmul %0, %1, %cst {dimension_numbers = #tpu.dot_dimension_numbers<[1], [0], [0], [1], [0, 0, 1, 1], [], []>} : vector<16x32xf32>, vector<32x32xf32>, vector<16x32xf32> -> vector<16x32xf32>
    %c0_3 = arith.constant 0 : index
    %c0_4 = arith.constant 0 : index
    %3 = vector.load %arg3[%c0_3, %c0_4] : memref<1x32xf32, #tpu.memory_space<vmem>>, vector<1x32xf32>
    %4 = vector.broadcast %3 : vector<1x32xf32> to vector<16x32xf32>
    %5 = arith.addf %2, %4 : vector<16x32xf32>
    %c0_5 = arith.constant 0 : index
    %c0_6 = arith.constant 0 : index
    %6 = vector.load %arg4[%c0_5, %c0_6] : memref<16x32xf32, #tpu.memory_space<vmem>>, vector<16x32xf32>
    %7 = arith.addf %5, %6 : vector<16x32xf32>
    %c0_7 = arith.constant 0 : index
    %c0_8 = arith.constant 0 : index
    %8 = vector.load %arg5[%c0_7, %c0_8] : memref<16x32xf32, #tpu.memory_space<vmem>>, vector<16x32xf32>
    tpu.vector_store %arg5[%c0_7, %c0_8], %7 {strides = array<i32>} : memref<16x32xf32, #tpu.memory_space<vmem>>, vector<16x32xf32>,
    return
  }
  func.func @transform_0(%arg0: i32) -> (i32, i32) {
    %c0_i32 = arith.constant 0 : i32
    %c0_i32_0 = arith.constant 0 : i32
    return %arg0, %c0_i32 : i32, i32
  }
  func.func @transform_1(%arg0: i32) -> (i32, i32) {
    %c0_i32 = arith.constant 0 : i32
    %c0_i32_0 = arith.constant 0 : i32
    %c0_i32_1 = arith.constant 0 : i32
    return %c0_i32, %c0_i32_0 : i32, i32
  }
  func.func @transform_2(%arg0: i32) -> (i32, i32) {
    %c0_i32 = arith.constant 0 : i32
    %c0_i32_0 = arith.constant 0 : i32
    %c0_i32_1 = arith.constant 0 : i32
    return %c0_i32, %c0_i32_0 : i32, i32
  }
  func.func @transform_3(%arg0: i32) -> (i32, i32) {
    %c0_i32 = arith.constant 0 : i32
    %c0_i32_0 = arith.constant 0 : i32
    return %arg0, %c0_i32 : i32, i32
  }
  func.func @transform_4(%arg0: i32) -> (i32, i32) {
    %c0_i32 = arith.constant 0 : i32
    %c0_i32_0 = arith.constant 0 : i32
    return %arg0, %c0_i32 : i32, i32
  }
}

</mosaic_0001>

<llo_original>
// kernel: tpu_custom_call.1
$region0: #{tpu_custom_call.1}
  #allocation0 [shape = 'u32[]', space=smem, size = 0x4, offset = 0x4, fixed_abs, tag = 'smem constant byte address 0x4 - core index']
  #allocation1 [shape = 'u32[144,128]{1,0:T(1,128)}', space=vmem, size = 0x12000, scoped, tag = 'internal scratch']
  %s0 = inlined_call_operand.hbm [shape: f32[16,32], index: 0, kind: input, shape index: {}]
  %s1 = inlined_call_operand.vmem [shape: f32[32,32], index: 1, kind: input, shape index: {}]
  %s2 = inlined_call_operand.vmem [shape: f32[1,32], index: 2, kind: input, shape index: {}]
  %s3 = inlined_call_operand.hbm [shape: f32[16,32], index: 3, kind: input, shape index: {}, may-alias: {3,4}]
  %s4 = inlined_call_operand.hbm [shape: f32[16,32], index: 4, kind: output, shape index: {}, may-alias: {3,4}]
  %s5 = sld [smem:[#allocation0]]
  $region34: #{tpu_custom_call.1} parent=0
    _
  %s7 = ssub.s32 1, %s5
  %s8 = scalar_select 0, %s7, %s5
  $region1: #{tpu_custom_call.1} parent=0
    #allocation2 [shape = 'u8[8192]{0}', space=vmem, size = 0x2000, scoped, tag = 'input window, operand 0, single buffered']
    #allocation3 [shape = 's32[1]{0}', space=sflag, size = 0x4, scoped, tag = 'scoped memory for tpu_custom_call.1']
    #allocation4 [shape = 's32[1]{0}', space=sflag, size = 0x4, scoped, tag = 'scoped memory for tpu_custom_call.1']
    #allocation5 [shape = 'u8[8192]{0}', space=vmem, size = 0x2000, scoped, tag = 'input window, operand 3, single buffered']
    #allocation6 [shape = 's32[1]{0}', space=sflag, size = 0x4, scoped, tag = 'scoped memory for tpu_custom_call.1']
    #allocation7 [shape = 'u8[8192]{0}', space=vmem, size = 0x2000, scoped, tag = 'output window, operand 0, single buffered']
    %9 = vsyncpa [#allocation3], 0
    %10 = vsyncpa [#allocation6], 0
    %11 = vsyncpa [#allocation4], 0
    // Predicated region
    $region2: #{tpu_custom_call.1} parent=1 // pred_check
      _
    $region3: #{tpu_custom_call.1} parent=1 // pred_check_branch
      %13 = sbr.rel (0) target = $region5
    $region4: #{tpu_custom_call.1} parent=1 // pred_region
      %s15 = ssub.s32 256, 256
      %16 = vsyncadd [#allocation3], %s15
      %s17 = sshll.u32 [#allocation2], 4
      %s18 = int_to_ptr.vmem [resolvable:$true] %s17
      %23 = dma.hbm_to_vmem [thread:$0]  %s0, 256, %s18, [#allocation3], 128, 128, 8
    $region5: #{tpu_custom_call.1} parent=1 // pred_fallthru
      _
    // Predicated region
    $region6: #{tpu_custom_call.1} parent=1 // pred_check
      _
    $region7: #{tpu_custom_call.1} parent=1 // pred_check_branch
      %25 = sbr.rel (0) target = $region9
    $region8: #{tpu_custom_call.1} parent=1 // pred_region
      _
    $region9: #{tpu_custom_call.1} parent=1 // pred_fallthru
      _
    // Predicated region
    $region10: #{tpu_custom_call.1} parent=1 // pred_check
      _
    $region11: #{tpu_custom_call.1} parent=1 // pred_check_branch
      %27 = sbr.rel (0) target = $region13
    $region12: #{tpu_custom_call.1} parent=1 // pred_region
      _
    $region13: #{tpu_custom_call.1} parent=1 // pred_fallthru
      _
    // Predicated region
    $region14: #{tpu_custom_call.1} parent=1 // pred_check
      _
    $region15: #{tpu_custom_call.1} parent=1 // pred_check_branch
      %29 = sbr.rel (0) target = $region17
    $region16: #{tpu_custom_call.1} parent=1 // pred_region
      %s31 = ssub.s32 256, 256
      %32 = vsyncadd [#allocation6], %s31
      %s33 = sshll.u32 [#allocation5], 4
      %s34 = int_to_ptr.vmem [resolvable:$true] %s33
      %39 = dma.hbm_to_vmem [thread:$0]  %s3, 256, %s34, [#allocation6], 128, 128, 8
    $region17: #{tpu_custom_call.1} parent=1 // pred_fallthru
      _
    // Predicated region
    $region18: #{tpu_custom_call.1} parent=1 // pred_check
      _
    $region19: #{tpu_custom_call.1} parent=1 // pred_check_branch
      %41 = sbr.rel (0) target = $region21
    $region20: #{tpu_custom_call.1} parent=1 // pred_region
      %42 = dma.done [#allocation3], 256
    $region21: #{tpu_custom_call.1} parent=1 // pred_fallthru
      _
    // Predicated region
    $region22: #{tpu_custom_call.1} parent=1 // pred_check
      _
    $region23: #{tpu_custom_call.1} parent=1 // pred_check_branch
      %44 = sbr.rel (0) target = $region25
    $region24: #{tpu_custom_call.1} parent=1 // pred_region
      %45 = dma.done [#allocation6], 256
    $region25: #{tpu_custom_call.1} parent=1 // pred_fallthru
      _
    %v46 = vld [vmem:[#allocation2] sm:$0xff]
    %v47 = vld [vmem:[#allocation2 + $0x8] sm:$0xff]
    %v48 = vld [vmem:[%s1] sm:$0xff]
    %v49 = vld [vmem:[%s1 + $0x8] sm:$0xff]
    %v50 = vld [vmem:[%s1 + $0x10] sm:$0xff]
    %v51 = vld [vmem:[%s1 + $0x18] sm:$0xff]
    %v52 = vld [vmem:[%s2] sm:$0x1]
    %v54 = vlaneseq
    %v55 = vshrl.u32 %v54, 7
    %v56 = vsub.s32 0, %v55
    %v57 = vrot.slane %v52, %v56
    %vm59 = vcmask 261120
    %v61 = vsel %vm59, %v46, 0
    %v64 = vsel %vm59, %v47, 0
    %66 = vmatprep.subr.mxu0 0.0
    %67 = vmatpush1.msra.mxu0 %v48
    %68 = vmatprep.subr.mxu0 0.0
    %69 = vmatpush1.msra.mxu0 %v49
    %70 = vmatprep.subr.mxu0 0.0
    %71 = vmatpush1.msra.mxu0 %v50
    %72 = vmatprep.subr.mxu0 0.0
    %73 = vmatpush1.msra.mxu0 %v51
    %74 = vmatprep.subr.mxu0 0.0
    %75 = vmatpush1.msra.mxu0 0.0
    %76 = vmatprep.subr.mxu0 0.0
    %77 = vmatpush1.msra.mxu0 0.0
    %78 = vmatprep.subr.mxu0 0.0
    %79 = vmatpush1.msra.mxu0 0.0
    %80 = vmatprep.subr.mxu0 0.0
    %81 = vmatpush1.msra.mxu0 0.0
    %82 = vmatprep.subr.mxu0 0.0
    %83 = vmatpush1.msra.mxu0 0.0
    %84 = vmatprep.subr.mxu0 0.0
    %85 = vmatpush1.msra.mxu0 0.0
    %86 = vmatprep.subr.mxu0 0.0
    %87 = vmatpush1.msra.mxu0 0.0
    %88 = vmatprep.subr.mxu0 0.0
    %89 = vmatpush1.msra.mxu0 0.0
    %90 = vmatprep.subr.mxu0 0.0
    %91 = vmatpush1.msra.mxu0 0.0
    %92 = vmatprep.subr.mxu0 0.0
    %93 = vmatpush1.msra.mxu0 0.0
    %94 = vmatprep.subr.mxu0 0.0
    %95 = vmatpush1.msra.mxu0 0.0
    %96 = vmatprep.subr.mxu0 0.0
    %97 = vmatpush1.msra.mxu0 0.0
    %98 = vmatprep.subr.mxu0 0.0
    %99 = vmatpush1.msra.mxu0 0.0
    %100 = vmatprep.subr.mxu0 0.0
    %101 = vmatpush1.msra.mxu0 0.0
    %102 = vmatprep.subr.mxu0 0.0
    %103 = vmatpush1.msra.mxu0 0.0
    %104 = vmatprep.subr.mxu0 0.0
    %105 = vmatpush1.msra.mxu0 0.0
    %106 = vmatprep.subr.mxu0 0.0
    %107 = vmatpush1.msra.mxu0 0.0
    %108 = vmatprep.subr.mxu0 0.0
    %109 = vmatpush1.msra.mxu0 0.0
    %110 = vmatprep.subr.mxu0 0.0
    %111 = vmatpush1.msra.mxu0 0.0
    %112 = vmatprep.subr.mxu0 0.0
    %113 = vmatpush1.msra.mxu0 0.0
    %114 = vmatprep.subr.mxu0 0.0
    %115 = vmatpush1.msra.mxu0 0.0
    %116 = vmatprep.subr.mxu0 0.0
    %117 = vmatpush1.msra.mxu0 0.0
    %118 = vmatprep.subr.mxu0 0.0
    %119 = vmatpush1.msra.mxu0 0.0
    %120 = vmatprep.subr.mxu0 0.0
    %121 = vmatpush1.msra.mxu0 0.0
    %122 = vmatprep.subr.mxu0 0.0
    %123 = vmatpush1.msra.mxu0 0.0
    %124 = vmatprep.subr.mxu0 0.0
    %125 = vmatpush1.msra.mxu0 0.0
    %126 = vmatprep.subr.mxu0 0.0
    %127 = vmatpush1.msra.mxu0 0.0
    %128 = vmatprep.subr.mxu0 0.0
    %129 = vmatpush1.msra.mxu0 0.0
    %130 = vmatprep.mubr.f32.mxu0 0.0
    %131 = vmatmul.mubr.f32.gmra.mrb[0].mxu0 %v61
    %v132 = vpop.f32.mrb[0].mxu0
    %v133 = vadd.f32 %v57, %v132
    %v134 = vpop.f32.mrb[0].mxu0
    %135 = vmatprep.mubr.f32.mxu0 0.0
    %136 = vmatmul.mubr.f32.gmra.mrb[0].mxu0 %v64
    %v137 = vpop.f32.mrb[0].mxu0
    %v138 = vadd.f32 %v57, %v137
    %v139 = vpop.f32.mrb[0].mxu0
    %140 = vdwg.mxu0
    %v141 = vld [vmem:[#allocation5] sm:$0xff]
    %v142 = vld [vmem:[#allocation5 + $0x8] sm:$0xff]
    %v143 = vadd.f32 %v133, %v141
    %v144 = vadd.f32 %v138, %v142
    %145 = vst.msk [vmem:[#allocation7] sm:$0xff] %vm59, %v143
    %146 = vst.msk [vmem:[#allocation7 + $0x8] sm:$0xff] %vm59, %v144
    // Predicated region
    $region26: #{tpu_custom_call.1} parent=1 // pred_check
      _
    $region27: #{tpu_custom_call.1} parent=1 // pred_check_branch
      %148 = sbr.rel (0) target = $region29
    $region28: #{tpu_custom_call.1} parent=1 // pred_region
      %s150 = ssub.s32 256, 256
      %151 = vsyncadd [#allocation4], %s150
      %s152 = sshll.u32 [#allocation7], 4
      %s153 = int_to_ptr.vmem [resolvable:$true] %s152
      %158 = dma.vmem_to_hbm [thread:$0]  %s153, 256, %s4, [#allocation4], 128, 128, 8
    $region29: #{tpu_custom_call.1} parent=1 // pred_fallthru
      _
    // Predicated region
    $region30: #{tpu_custom_call.1} parent=1 // pred_check
      _
    $region31: #{tpu_custom_call.1} parent=1 // pred_check_branch
      %160 = sbr.rel (0) target = $region33
    $region32: #{tpu_custom_call.1} parent=1 // pred_region
      %161 = dma.done [#allocation4], 256
    $region33: #{tpu_custom_call.1} parent=1 // pred_fallthru
      _
    %162 = vsyncpa [#allocation3], 1
    %163 = vsyncpa [#allocation6], 1
    %164 = vsyncpa [#allocation4], 1

</llo_original>
